<compile_context>
chip_gen: v7x
topology: tpu7x:2x2x1
jax: 0.10.0
libtpu: 0.0.40
codegen_flags: <defaults>
</compile_context>

<pallas_src>
import jax
import jax.numpy as jnp
from jax.experimental import pallas as pl
from jax.experimental.pallas import tpu as pltpu


EPS = 1e-6


def _round_up(x, m):
    return ((x + m - 1) // m) * m


def _vmem_capacity_bytes():
    try:
        return int(pltpu.get_tpu_info().vmem_capacity_bytes)
    except Exception:
        return 128 << 20


def _sublayer_connection_kernel(x_ref, xr_ref, w_ref, b_ref, o_ref):
    # x_ref : (TR, H)   full-feature row tile (LayerNorm stats + matmul K dim)
    # xr_ref: (TR, TC)  column-sliced view of the same x rows (residual add)
    # w_ref : (H, TC)   column slab of the folded weight (gamma folded in)
    # b_ref : (1, TC)   folded bias (beta @ w + b), f32
    # o_ref : (TR, TC)
    xf = x_ref[...].astype(jnp.float32)
    h = xf.shape[-1]

    # --- LayerNorm statistics (unbiased std, like torch.std default) ---
    mean = jnp.mean(xf, axis=-1, keepdims=True)
    centered = xf - mean
    var_unbiased = jnp.sum(centered * centered, axis=-1, keepdims=True) / (h - 1)
    inv = pl.reciprocal(jnp.sqrt(var_unbiased) + EPS, approx=False)

    # Cast to the MXU operand dtype immediately so the f32 temps (xf, centered)
    # are dead before the matmul -> lower VMEM / regalloc pressure.
    xn = (centered * inv).astype(w_ref.dtype)

    # --- sublayer: Linear(H, H), one output-column slab on the MXU ---
    y = jnp.dot(xn, w_ref[...], preferred_element_type=jnp.float32)
    y = y + b_ref[...].astype(jnp.float32)

    # --- dropout: eval mode => identity ---

    # --- residual: re-read x (column slab view) AFTER the dot ---
    o_ref[...] = (xr_ref[...].astype(jnp.float32) + y).astype(o_ref.dtype)


def sublayer_connection(x, gamma, beta, w, b, *, mxu_dtype=None,
                        tile_rows=None, tile_cols=None, vmem_limit_bytes=None):
    """x: [B, S, H]  gamma/beta/b: [H]  w: [H, H]  -> [B, S, H]

    mxu_dtype: dtype of the matmul operands (pass jnp.bfloat16 on v5e/v6e/v7x
    for the bf16-native MXU; accumulation is always f32).
    """
    B, S, H = x.shape
    rows = B * S
    if H < 2:
        raise ValueError("hidden size must be >= 2 (torch.std divides by N-1)")

    if mxu_dtype is None:
        mxu_dtype = w.dtype

    # Fold LayerNorm affine into the linear layer (purely algebraic, in f32):
    #   (gamma*xhat + beta) @ w + b == xhat @ (gamma[:,None]*w) + (beta@w + b)
    w32 = w.astype(jnp.float32)
    w_folded = (gamma.astype(jnp.float32)[:, None] * w32).astype(mxu_dtype)
    b_folded = (beta.astype(jnp.float32) @ w32
                + b.astype(jnp.float32)).reshape(1, H).astype(jnp.float32)

    x2 = x.reshape(rows, H)
    x_bytes = jnp.dtype(x.dtype).itemsize
    w_bytes = jnp.dtype(mxu_dtype).itemsize

    # --- generation-aware sizing ---
    cap = _vmem_capacity_bytes()
    if vmem_limit_bytes is None:
        vmem_limit_bytes = int(min(96 << 20, cap * 3 // 4))
    if tile_rows is None:
        # 512 on 128 MiB parts (v5e/v6e), 256 on v7x (64 MiB).
        tile_rows = 512 if cap >= (100 << 20) else 256
    tile_rows = max(8, min(_round_up(tile_rows, 8), _round_up(rows, 8)))

    if tile_cols is None:
        tile_cols = 256
    if tile_cols >= H:
        tile_cols = H                       # single column tile (== full dim)
    else:
        tile_cols = max(128, (tile_cols // 128) * 128)  # lane-dense blocks
        if tile_cols >= H:
            tile_cols = H

    # Shrink tile_rows until the double-buffered working set + f32 temps fit.
    def _fits(tr):
        est = (2 * tr * H * x_bytes            # x full-K tile (double buffered)
               + 2 * tr * tile_cols * x_bytes  # residual x slab
               + 2 * H * tile_cols * w_bytes   # weight slab
               + 2 * tile_cols * 4             # bias slab
               + 2 * tr * tile_cols * x_bytes  # output slab
               + 3 * tr * H * 4                # f32 intermediates (xf, centered, ...)
               + tr * tile_cols * 4)           # f32 matmul result
        return est <= int(vmem_limit_bytes * 0.85)

    while tile_rows > 8 and not _fits(tile_rows):
        tile_rows = max(8, _round_up(tile_rows // 2, 8))

    ni = pl.cdiv(rows, tile_rows)   # row tiles (ragged tail handled by Pallas)
    nj = pl.cdiv(H, tile_cols)      # output-column tiles

    # Grid ordering: the block whose index is constant over the INNER axis is
    # DMA'd once per outer step. Pick the order that minimizes refetch bytes.
    rows_outer_refetch = (ni - 1) * H * H * w_bytes       # weight re-streamed per row tile
    cols_outer_refetch = (nj - 1) * rows * H * x_bytes    # x re-streamed per column tile
    cols_outer = cols_outer_refetch < rows_outer_refetch

    if cols_outer:
        grid = (nj, ni)
        x_spec = pl.BlockSpec((tile_rows, H), lambda j, i: (i, 0))
        xr_spec = pl.BlockSpec((tile_rows, tile_cols), lambda j, i: (i, j))
        w_spec = pl.BlockSpec((H, tile_cols), lambda j, i: (0, j))
        b_spec = pl.BlockSpec((1, tile_cols), lambda j, i: (0, j))
        o_spec = pl.BlockSpec((tile_rows, tile_cols), lambda j, i: (i, j))
    else:
        grid = (ni, nj)
        x_spec = pl.BlockSpec((tile_rows, H), lambda i, j: (i, 0))
        xr_spec = pl.BlockSpec((tile_rows, tile_cols), lambda i, j: (i, j))
        w_spec = pl.BlockSpec((H, tile_cols), lambda i, j: (0, j))
        b_spec = pl.BlockSpec((1, tile_cols), lambda i, j: (0, j))
        o_spec = pl.BlockSpec((tile_rows, tile_cols), lambda i, j: (i, j))

    cost = pl.CostEstimate(
        flops=int(2 * rows * H * H + 8 * rows * H),
        transcendentals=int(2 * rows * nj),   # sqrt + reciprocal per row/col-tile
        bytes_accessed=int(2 * rows * H * x_bytes      # x (LN view + residual view)
                           + H * H * w_bytes + H * 4   # folded weight + bias
                           + rows * H * x_bytes),      # output
    )

    out2 = pl.pallas_call(
        _sublayer_connection_kernel,
        out_shape=jax.ShapeDtypeStruct((rows, H), x.dtype),
        grid_spec=pltpu.PrefetchScalarGridSpec(
            num_scalar_prefetch=0,
            grid=grid,
            in_specs=[x_spec, xr_spec, w_spec, b_spec],
            out_specs=o_spec,
        ),
        compiler_params=pltpu.CompilerParams(
            # No reduction axis: every output block is written exactly once,
            # so both axes are parallel (v7x megacore can shard columns).
            dimension_semantics=("parallel", "parallel"),
            vmem_limit_bytes=int(vmem_limit_bytes),
        ),
        cost_estimate=cost,
    )(x2, x2, w_folded, b_folded)

    return out2.reshape(B, S, H)


def _reference(x, gamma, beta, w, b):
    xf = x.astype(jnp.float32)
    mean = jnp.mean(xf, axis=-1, keepdims=True)
    centered = xf - mean
    h = xf.shape[-1]
    std = jnp.sqrt(jnp.sum(centered * centered, axis=-1, keepdims=True) / (h - 1))
    xn = gamma * centered / (std + EPS) + beta
    y = xn @ w.astype(jnp.float32) + b
    return (xf + y).astype(x.dtype)


if __name__ == "__main__":
    key = jax.random.PRNGKey(0)

    # --- Test 1: module-sized smoke test (f32 MXU path, strict tolerance) ---
    B, S, H = 2, 8, 32
    kx, kw, kb = jax.random.split(key, 3)
    x = jax.random.normal(kx, (B, S, H), dtype=jnp.float32)
    gamma = jnp.ones((H,), dtype=jnp.float32)   # PyTorch LayerNorm init
    beta = jnp.zeros((H,), dtype=jnp.float32)
    w = jax.random.normal(kw, (H, H), dtype=jnp.float32) * (1.0 / jnp.sqrt(H))
    b = jax.random.normal(kb, (H,), dtype=jnp.float32) * 0.01

    out = jax.block_until_ready(sublayer_connection(x, gamma, beta, w, b))
    ref = _reference(x, gamma, beta, w, b)
    assert out.shape == (B, S, H)
    assert jnp.allclose(out, ref, atol=1e-4, rtol=1e-4), "mismatch vs reference (f32)"

    # --- Test 2: column-tiled + ragged-row path (still f32, strict) ---
    B2, S2, H2 = 2, 12, 256          # rows=24 not divisible by tile_rows=16
    k2x, k2g, k2bt, k2w, k2b = jax.random.split(jax.random.PRNGKey(0), 5)
    x2 = jax.random.normal(k2x, (B2, S2, H2), dtype=jnp.float32)
    g2 = 1.0 + 0.1 * jax.random.normal(k2g, (H2,), dtype=jnp.float32)
    bt2 = 0.1 * jax.random.normal(k2bt, (H2,), dtype=jnp.float32)
    w2 = jax.random.normal(k2w, (H2, H2), dtype=jnp.float32) * (1.0 / jnp.sqrt(H2))
    b2 = jax.random.normal(k2b, (H2,), dtype=jnp.float32) * 0.01

    out2 = jax.block_until_ready(
        sublayer_connection(x2, g2, bt2, w2, b2, tile_rows=16, tile_cols=128))
    ref2 = _reference(x2, g2, bt2, w2, b2)
    assert jnp.allclose(out2, ref2, atol=1e-4, rtol=1e-4), "mismatch (tiled f32)"

    # --- Test 3: bf16 MXU path (perf configuration), loose numeric check ---
    out3 = jax.block_until_ready(
        sublayer_connection(x2, g2, bt2, w2, b2, mxu_dtype=jnp.bfloat16,
                            tile_rows=16, tile_cols=128))
    assert jnp.allclose(out3, ref2, atol=1e-1, rtol=1e-1), "mismatch (bf16 MXU)"

    print("KERNEL_OK")
</pallas_src>

<mosaic_0001>
module attributes {stable_mosaic.version = 11 : i64} {
  func.func @_sublayer_connection_kernel(%arg0: i32, %arg1: i32, %arg2: memref<16x32xf32, #tpu.memory_space<vmem>>, %arg3: memref<16x32xf32, #tpu.memory_space<vmem>>, %arg4: memref<32x32xf32, #tpu.memory_space<vmem>>, %arg5: memref<1x32xf32, #tpu.memory_space<vmem>>, %arg6: memref<16x32xf32, #tpu.memory_space<vmem>>) attributes {dimension_semantics = [#tpu.dimension_semantics<parallel>, #tpu.dimension_semantics<parallel>], iteration_bounds = array<i64: 1, 1>, scalar_prefetch = 0 : i64, scratch_operands = 0 : i64, tpu.core_type = #tpu.core_type<tc>, window_params = [{transform_indices = @transform_0, window_bounds = array<i64: 16, 32>}, {transform_indices = @transform_1, window_bounds = array<i64: 16, 32>}, {transform_indices = @transform_2, window_bounds = array<i64: 32, 32>}, {transform_indices = @transform_3, window_bounds = array<i64: 1, 32>}, {transform_indices = @transform_4, window_bounds = array<i64: 16, 32>}]} {
    %c0 = arith.constant 0 : index
    %c0_0 = arith.constant 0 : index
    %0 = vector.load %arg2[%c0, %c0_0] : memref<16x32xf32, #tpu.memory_space<vmem>>, vector<16x32xf32>
    %cst = arith.constant dense<0.000000e+00> : vector<16xf32>
    %1 = vector.multi_reduction <add>, %0, %cst [1] : vector<16x32xf32> to vector<16xf32>
    %2 = vector.shape_cast %1 : vector<16xf32> to vector<16x1xf32>
    %cst_1 = arith.constant 3.200000e+01 : f32
    %3 = vector.broadcast %cst_1 : f32 to vector<16x1xf32>
    %4 = arith.divf %2, %3 : vector<16x1xf32>
    %5 = vector.broadcast %4 : vector<16x1xf32> to vector<16x32xf32>
    %6 = arith.subf %0, %5 : vector<16x32xf32>
    %7 = arith.mulf %6, %6 : vector<16x32xf32>
    %cst_2 = arith.constant dense<0.000000e+00> : vector<16xf32>
    %8 = vector.multi_reduction <add>, %7, %cst_2 [1] : vector<16x32xf32> to vector<16xf32>
    %9 = vector.shape_cast %8 : vector<16xf32> to vector<16x1xf32>
    %cst_3 = arith.constant 3.100000e+01 : f32
    %10 = vector.broadcast %cst_3 : f32 to vector<16x1xf32>
    %11 = arith.divf %9, %10 : vector<16x1xf32>
    %12 = math.sqrt %11 : vector<16x1xf32>
    %cst_4 = arith.constant 9.99999997E-7 : f32
    %13 = vector.broadcast %cst_4 : f32 to vector<16x1xf32>
    %14 = arith.addf %12, %13 : vector<16x1xf32>
    %15 = tpu.reciprocal %14 : vector<16x1xf32> -> vector<16x1xf32>
    %16 = vector.broadcast %15 : vector<16x1xf32> to vector<16x32xf32>
    %17 = arith.mulf %6, %16 : vector<16x32xf32>
    %c0_5 = arith.constant 0 : index
    %c0_6 = arith.constant 0 : index
    %18 = vector.load %arg4[%c0_5, %c0_6] : memref<32x32xf32, #tpu.memory_space<vmem>>, vector<32x32xf32>
    %cst_7 = arith.constant dense<0.000000e+00> : vector<16x32xf32>
    %19 = tpu.matmul %17, %18, %cst_7 {dimension_numbers = #tpu.dot_dimension_numbers<[1], [0], [0], [1], [0, 0, 1, 1], [], []>} : vector<16x32xf32>, vector<32x32xf32>, vector<16x32xf32> -> vector<16x32xf32>
    %c0_8 = arith.constant 0 : index
    %c0_9 = arith.constant 0 : index
    %20 = vector.load %arg5[%c0_8, %c0_9] : memref<1x32xf32, #tpu.memory_space<vmem>>, vector<1x32xf32>
    %21 = vector.broadcast %20 : vector<1x32xf32> to vector<16x32xf32>
    %22 = arith.addf %19, %21 : vector<16x32xf32>
    %c0_10 = arith.constant 0 : index
    %c0_11 = arith.constant 0 : index
    %23 = vector.load %arg3[%c0_10, %c0_11] : memref<16x32xf32, #tpu.memory_space<vmem>>, vector<16x32xf32>
    %24 = arith.addf %23, %22 : vector<16x32xf32>
    %c0_12 = arith.constant 0 : index
    %c0_13 = arith.constant 0 : index
    %25 = vector.load %arg6[%c0_12, %c0_13] : memref<16x32xf32, #tpu.memory_space<vmem>>, vector<16x32xf32>
    tpu.vector_store %arg6[%c0_12, %c0_13], %24 {strides = array<i32>} : memref<16x32xf32, #tpu.memory_space<vmem>>, vector<16x32xf32>,
    return
  }
  func.func @transform_0(%arg0: i32, %arg1: i32) -> (i32, i32) {
    %c0_i32 = arith.constant 0 : i32
    %c0_i32_0 = arith.constant 0 : i32
    return %arg0, %c0_i32 : i32, i32
  }
  func.func @transform_1(%arg0: i32, %arg1: i32) -> (i32, i32) {
    %c0_i32 = arith.constant 0 : i32
    return %arg0, %arg1 : i32, i32
  }
  func.func @transform_2(%arg0: i32, %arg1: i32) -> (i32, i32) {
    %c0_i32 = arith.constant 0 : i32
    %c0_i32_0 = arith.constant 0 : i32
    return %c0_i32, %arg1 : i32, i32
  }
  func.func @transform_3(%arg0: i32, %arg1: i32) -> (i32, i32) {
    %c0_i32 = arith.constant 0 : i32
    %c0_i32_0 = arith.constant 0 : i32
    return %c0_i32, %arg1 : i32, i32
  }
  func.func @transform_4(%arg0: i32, %arg1: i32) -> (i32, i32) {
    %c0_i32 = arith.constant 0 : i32
    return %arg0, %arg1 : i32, i32
  }
}

</mosaic_0001>

<llo_original>
// kernel: tpu_custom_call.1
$region0: #{tpu_custom_call.1}
  #allocation0 [shape = 'u32[]', space=smem, size = 0x4, offset = 0x4, fixed_abs, tag = 'smem constant byte address 0x4 - core index']
  #allocation1 [shape = 'u32[144,128]{1,0:T(1,128)}', space=vmem, size = 0x12000, scoped, tag = 'internal scratch']
  %s0 = inlined_call_operand.hbm [shape: f32[16,32], index: 0, kind: input, shape index: {}]
  %s1 = inlined_call_operand.hbm [shape: f32[16,32], index: 1, kind: input, shape index: {}]
  %s2 = inlined_call_operand.hbm [shape: f32[32,32], index: 2, kind: input, shape index: {}]
  %s3 = inlined_call_operand.hbm [shape: f32[1,32], index: 3, kind: input, shape index: {}]
  %s4 = inlined_call_operand.hbm [shape: f32[16,32], index: 4, kind: output, shape index: {}]
  %s5 = sld [smem:[#allocation0]]
  $region42: #{tpu_custom_call.1} parent=0
    _
  %s7 = ssub.s32 1, %s5
  %s8 = scalar_select 0, %s7, %s5
  $region1: #{tpu_custom_call.1} parent=0
    #allocation2 [shape = 'u8[8192]{0}', space=vmem, size = 0x2000, scoped, tag = 'input window, operand 0, single buffered']
    #allocation3 [shape = 's32[1]{0}', space=sflag, size = 0x4, scoped, tag = 'scoped memory for tpu_custom_call.1']
    #allocation4 [shape = 's32[1]{0}', space=sflag, size = 0x4, scoped, tag = 'scoped memory for tpu_custom_call.1']
    #allocation5 [shape = 'u8[8192]{0}', space=vmem, size = 0x2000, scoped, tag = 'input window, operand 1, single buffered']
    #allocation6 [shape = 's32[1]{0}', space=sflag, size = 0x4, scoped, tag = 'scoped memory for tpu_custom_call.1']
    #allocation7 [shape = 'u8[16384]{0}', space=vmem, size = 0x4000, scoped, tag = 'input window, operand 2, single buffered']
    #allocation8 [shape = 'u8[512]{0}', space=vmem, size = 0x400, scoped, tag = 'input window, operand 3, single buffered']
    #allocation9 [shape = 's32[1]{0}', space=sflag, size = 0x4, scoped, tag = 'scoped memory for tpu_custom_call.1']
    #allocation10 [shape = 'u8[8192]{0}', space=vmem, size = 0x2000, scoped, tag = 'output window, operand 0, single buffered']
    %9 = vsyncpa [#allocation3], 0
    %10 = vsyncpa [#allocation6], 0
    %11 = vsyncpa [#allocation9], 0
    %12 = vsyncpa [#allocation4], 0
    // Predicated region
    $region2: #{tpu_custom_call.1} parent=1 // pred_check
      _
    $region3: #{tpu_custom_call.1} parent=1 // pred_check_branch
      %14 = sbr.rel (0) target = $region5
    $region4: #{tpu_custom_call.1} parent=1 // pred_region
      %s16 = ssub.s32 256, 256
      %17 = vsyncadd [#allocation3], %s16
      %s18 = sshll.u32 [#allocation2], 4
      %s19 = int_to_ptr.vmem [resolvable:$true] %s18
      %24 = dma.hbm_to_vmem [thread:$0]  %s0, 256, %s19, [#allocation3], 128, 128, 8
    $region5: #{tpu_custom_call.1} parent=1 // pred_fallthru
      _
    // Predicated region
    $region6: #{tpu_custom_call.1} parent=1 // pred_check
      _
    $region7: #{tpu_custom_call.1} parent=1 // pred_check_branch
      %26 = sbr.rel (0) target = $region9
    $region8: #{tpu_custom_call.1} parent=1 // pred_region
      %s28 = ssub.s32 256, 256
      %29 = vsyncadd [#allocation6], %s28
      %s30 = sshll.u32 [#allocation5], 4
      %s31 = int_to_ptr.vmem [resolvable:$true] %s30
      %36 = dma.hbm_to_vmem [thread:$0]  %s1, 256, %s31, [#allocation6], 128, 128, 8
    $region9: #{tpu_custom_call.1} parent=1 // pred_fallthru
      _
    // Predicated region
    $region10: #{tpu_custom_call.1} parent=1 // pred_check
      _
    $region11: #{tpu_custom_call.1} parent=1 // pred_check_branch
      %38 = sbr.rel (0) target = $region13
    $region12: #{tpu_custom_call.1} parent=1 // pred_region
      %s40 = ssub.s32 512, 512
      %41 = vsyncadd [#allocation6], %s40
      %s42 = sshll.u32 [#allocation7], 4
      %s43 = int_to_ptr.vmem [resolvable:$true] %s42
      %48 = dma.hbm_to_vmem [thread:$0]  %s2, 512, %s43, [#allocation6], 128, 128, 8
    $region13: #{tpu_custom_call.1} parent=1 // pred_fallthru
      _
    // Predicated region
    $region14: #{tpu_custom_call.1} parent=1 // pred_check
      _
    $region15: #{tpu_custom_call.1} parent=1 // pred_check_branch
      %50 = sbr.rel (0) target = $region17
    $region16: #{tpu_custom_call.1} parent=1 // pred_region
      %s52 = ssub.s32 16, 16
      %53 = vsyncadd [#allocation9], %s52
      %s55 = sshll.u32 [#allocation8], 4
      %s56 = int_to_ptr.vmem [resolvable:$true] %s55
      %58 = dma.hbm_to_vmem [thread:$0]  %s3, 16, %s56, [#allocation9]
    $region17: #{tpu_custom_call.1} parent=1 // pred_fallthru
      _
    // Predicated region
    $region18: #{tpu_custom_call.1} parent=1 // pred_check
      _
    $region19: #{tpu_custom_call.1} parent=1 // pred_check_branch
      %60 = sbr.rel (0) target = $region21
    $region20: #{tpu_custom_call.1} parent=1 // pred_region
      %61 = dma.done [#allocation3], 256
    $region21: #{tpu_custom_call.1} parent=1 // pred_fallthru
      _
    // Predicated region
    $region22: #{tpu_custom_call.1} parent=1 // pred_check
      _
    $region23: #{tpu_custom_call.1} parent=1 // pred_check_branch
      %63 = sbr.rel (0) target = $region25
    $region24: #{tpu_custom_call.1} parent=1 // pred_region
      %64 = dma.done [#allocation6], 256
    $region25: #{tpu_custom_call.1} parent=1 // pred_fallthru
      _
    // Predicated region
    $region26: #{tpu_custom_call.1} parent=1 // pred_check
      _
    $region27: #{tpu_custom_call.1} parent=1 // pred_check_branch
      %66 = sbr.rel (0) target = $region29
    $region28: #{tpu_custom_call.1} parent=1 // pred_region
      %67 = dma.done [#allocation6], 512
    $region29: #{tpu_custom_call.1} parent=1 // pred_fallthru
      _
    // Predicated region
    $region30: #{tpu_custom_call.1} parent=1 // pred_check
      _
    $region31: #{tpu_custom_call.1} parent=1 // pred_check_branch
      %69 = sbr.rel (0) target = $region33
    $region32: #{tpu_custom_call.1} parent=1 // pred_region
      %70 = dma.done [#allocation9], 16
    $region33: #{tpu_custom_call.1} parent=1 // pred_fallthru
      _
    %v71 = vld [vmem:[#allocation2] sm:$0xff]
    %v72 = vld [vmem:[#allocation2 + $0x8] sm:$0xff]
    %vm73 = vcmask 261120
    %v74 = vsel %vm73, %v71, 0.0
    %75 = vadd.xlane.f32.xlu0 %v74
    %v76 = vpop.xlane.xlu0 %75
    %v77 = vsel %vm73, %v72, 0.0
    %78 = vadd.xlane.f32.xlu0 %v77
    %v79 = vpop.xlane.xlu0 %78
    %v80 = vrcp.pop 32.0
    %v81 = vmul.f32 %v76, %v80
    %v82 = vmul.f32 %v79, %v80
    %v83 = vsub.f32 %v71, %v81
    %v84 = vsub.f32 %v72, %v82
    %v85 = vmul.f32 %v83, %v83
    %v86 = vmul.f32 %v84, %v84
    %v87 = vsel %vm73, %v85, 0.0
    %88 = vadd.xlane.f32.xlu0 %v87
    %v89 = vpop.xlane.xlu0 %88
    %v90 = vsel %vm73, %v86, 0.0
    %91 = vadd.xlane.f32.xlu0 %v90
    %v92 = vpop.xlane.xlu0 %91
    %v93 = vrcp.pop 31.0
    %v94 = vmul.f32 %v89, %v93
    %v95 = vmul.f32 %v92, %v93
    %v96 = vrsqrt.pop %v94
    %v97 = vmul.f32 %v94, %v96
    %vm98 = vcmp.eq.f32.partialorder %v94, inf
    %v99 = vsel %vm98, %v94, %v97
    %vm100 = vcmp.eq.f32.partialorder %v94, 0.0
    %v101 = vand.u32 %v94, 2147483648
    %v102 = vsel %vm100, %v101, %v99
    %v103 = vrsqrt.pop %v95
    %v104 = vmul.f32 %v95, %v103
    %vm105 = vcmp.eq.f32.partialorder %v95, inf
    %v106 = vsel %vm105, %v95, %v104
    %vm107 = vcmp.eq.f32.partialorder %v95, 0.0
    %v108 = vand.u32 %v95, 2147483648
    %v109 = vsel %vm107, %v108, %v106
    %v110 = vadd.f32 %v102, 1e-06
    %v111 = vadd.f32 %v109, 1e-06
    %v112 = vrcp.pop %v110
    %v113 = vrcp.pop %v111
    %v114 = vmul.f32 %v83, %v112
    %v115 = vmul.f32 %v84, %v113
    %v116 = vld [vmem:[#allocation7] sm:$0xff]
    %v117 = vld [vmem:[#allocation7 + $0x8] sm:$0xff]
    %v118 = vld [vmem:[#allocation7 + $0x10] sm:$0xff]
    %v119 = vld [vmem:[#allocation7 + $0x18] sm:$0xff]
    %v120 = vld [vmem:[#allocation8] sm:$0x1]
    %v122 = vlaneseq
    %v123 = vshrl.u32 %v122, 7
    %v124 = vsub.s32 0, %v123
    %v125 = vrot.slane %v120, %v124
    %v128 = vsel %vm73, %v114, 0
    %v131 = vsel %vm73, %v115, 0
    %133 = vmatprep.subr.mxu0 0.0
    %134 = vmatpush1.msra.mxu0 %v116
    %135 = vmatprep.subr.mxu0 0.0
    %136 = vmatpush1.msra.mxu0 %v117
    %137 = vmatprep.subr.mxu0 0.0
    %138 = vmatpush1.msra.mxu0 %v118
    %139 = vmatprep.subr.mxu0 0.0
    %140 = vmatpush1.msra.mxu0 %v119
    %141 = vmatprep.subr.mxu0 0.0
    %142 = vmatpush1.msra.mxu0 0.0
    %143 = vmatprep.subr.mxu0 0.0
    %144 = vmatpush1.msra.mxu0 0.0
    %145 = vmatprep.subr.mxu0 0.0
    %146 = vmatpush1.msra.mxu0 0.0
    %147 = vmatprep.subr.mxu0 0.0
    %148 = vmatpush1.msra.mxu0 0.0
    %149 = vmatprep.subr.mxu0 0.0
    %150 = vmatpush1.msra.mxu0 0.0
    %151 = vmatprep.subr.mxu0 0.0
    %152 = vmatpush1.msra.mxu0 0.0
    %153 = vmatprep.subr.mxu0 0.0
    %154 = vmatpush1.msra.mxu0 0.0
    %155 = vmatprep.subr.mxu0 0.0
    %156 = vmatpush1.msra.mxu0 0.0
    %157 = vmatprep.subr.mxu0 0.0
    %158 = vmatpush1.msra.mxu0 0.0
    %159 = vmatprep.subr.mxu0 0.0
    %160 = vmatpush1.msra.mxu0 0.0
    %161 = vmatprep.subr.mxu0 0.0
    %162 = vmatpush1.msra.mxu0 0.0
    %163 = vmatprep.subr.mxu0 0.0
    %164 = vmatpush1.msra.mxu0 0.0
    %165 = vmatprep.subr.mxu0 0.0
    %166 = vmatpush1.msra.mxu0 0.0
    %167 = vmatprep.subr.mxu0 0.0
    %168 = vmatpush1.msra.mxu0 0.0
    %169 = vmatprep.subr.mxu0 0.0
    %170 = vmatpush1.msra.mxu0 0.0
    %171 = vmatprep.subr.mxu0 0.0
    %172 = vmatpush1.msra.mxu0 0.0
    %173 = vmatprep.subr.mxu0 0.0
    %174 = vmatpush1.msra.mxu0 0.0
    %175 = vmatprep.subr.mxu0 0.0
    %176 = vmatpush1.msra.mxu0 0.0
    %177 = vmatprep.subr.mxu0 0.0
    %178 = vmatpush1.msra.mxu0 0.0
    %179 = vmatprep.subr.mxu0 0.0
    %180 = vmatpush1.msra.mxu0 0.0
    %181 = vmatprep.subr.mxu0 0.0
    %182 = vmatpush1.msra.mxu0 0.0
    %183 = vmatprep.subr.mxu0 0.0
    %184 = vmatpush1.msra.mxu0 0.0
    %185 = vmatprep.subr.mxu0 0.0
    %186 = vmatpush1.msra.mxu0 0.0
    %187 = vmatprep.subr.mxu0 0.0
    %188 = vmatpush1.msra.mxu0 0.0
    %189 = vmatprep.subr.mxu0 0.0
    %190 = vmatpush1.msra.mxu0 0.0
    %191 = vmatprep.subr.mxu0 0.0
    %192 = vmatpush1.msra.mxu0 0.0
    %193 = vmatprep.subr.mxu0 0.0
    %194 = vmatpush1.msra.mxu0 0.0
    %195 = vmatprep.subr.mxu0 0.0
    %196 = vmatpush1.msra.mxu0 0.0
    %197 = vmatprep.mubr.f32.mxu0 0.0
    %198 = vmatmul.mubr.f32.gmra.mrb[0].mxu0 %v128
    %v199 = vpop.f32.mrb[0].mxu0
    %v200 = vadd.f32 %v125, %v199
    %v201 = vpop.f32.mrb[0].mxu0
    %202 = vmatprep.mubr.f32.mxu0 0.0
    %203 = vmatmul.mubr.f32.gmra.mrb[0].mxu0 %v131
    %v204 = vpop.f32.mrb[0].mxu0
    %v205 = vadd.f32 %v125, %v204
    %v206 = vpop.f32.mrb[0].mxu0
    %207 = vdwg.mxu0
    %v208 = vld [vmem:[#allocation5] sm:$0xff]
    %v209 = vld [vmem:[#allocation5 + $0x8] sm:$0xff]
    %v210 = vadd.f32 %v208, %v200
    %v211 = vadd.f32 %v209, %v205
    %212 = vst.msk [vmem:[#allocation10] sm:$0xff] %vm73, %v210
    %213 = vst.msk [vmem:[#allocation10 + $0x8] sm:$0xff] %vm73, %v211
    // Predicated region
    $region34: #{tpu_custom_call.1} parent=1 // pred_check
      _
    $region35: #{tpu_custom_call.1} parent=1 // pred_check_branch
      %215 = sbr.rel (0) target = $region37
    $region36: #{tpu_custom_call.1} parent=1 // pred_region
      %s217 = ssub.s32 256, 256
      %218 = vsyncadd [#allocation4], %s217
      %s219 = sshll.u32 [#allocation10], 4
      %s220 = int_to_ptr.vmem [resolvable:$true] %s219
      %225 = dma.vmem_to_hbm [thread:$0]  %s220, 256, %s4, [#allocation4], 128, 128, 8
    $region37: #{tpu_custom_call.1} parent=1 // pred_fallthru
      _
    // Predicated region
    $region38: #{tpu_custom_call.1} parent=1 // pred_check
      _
    $region39: #{tpu_custom_call.1} parent=1 // pred_check_branch
      %227 = sbr.rel (0) target = $region41
    $region40: #{tpu_custom_call.1} parent=1 // pred_region
      %228 = dma.done [#allocation4], 256
    $region41: #{tpu_custom_call.1} parent=1 // pred_fallthru
      _
    %229 = vsyncpa [#allocation3], 1
    %230 = vsyncpa [#allocation6], 1
    %231 = vsyncpa [#allocation9], 1
    %232 = vsyncpa [#allocation4], 1

</llo_original>
